<compile_context>
chip_gen: v7x
topology: tpu7x:2x2x1
jax: 0.10.0
libtpu: 0.0.40
codegen_flags: <defaults>
</compile_context>

<pallas_src>
import functools

import jax
import jax.numpy as jnp
from jax.experimental import pallas as pl
from jax.experimental.pallas import tpu as pltpu

LRELU_SLOPE = 0.2
BN_EPS = 1e-5
LANE = 128
MAX_TM = 512


def _round_up(x, m):
    return ((x + m - 1) // m) * m


# ----------------------------- Pallas kernel --------------------------------

def _conv_kernel(p_ref, w_ref, ps_ref, pb_ref, b_ref, *out_refs,
                 tm, m_true, has_pre, add_bias, post_lrelu, with_stats):
    """Fused conv layer over one (tm, Kp) patch tile.

    p_ref  : (tm, Kp)   bf16 patch tile (zero rows beyond m_true, zero K-pad)
    w_ref  : (Kp, Cop)  bf16 weights (zero rows/cols in the padding)
    ps_ref : (1, Kp)    f32 folded BN scale of the previous block (per K elem)
    pb_ref : (1, Kp)    f32 folded BN shift of the previous block
    b_ref  : (1, Cop)   f32 bias
    out    : (tm, Cop) conv output [, (1, Cop) sum, (1, Cop) sumsq]
    """
    if with_stats:
        o_ref, sum_ref, sumsq_ref = out_refs
    else:
        (o_ref,) = out_refs

    p = p_ref[...]
    if has_pre:
        # Previous block's BatchNorm (folded) + LeakyReLU, applied to the patch
        # tile in f32.  Zero-padded K columns hit zero weight rows, so whatever
        # the affine produces there contributes nothing to the matmul.
        pf = p.astype(jnp.float32) * ps_ref[...] + pb_ref[...]
        pf = jnp.where(pf >= 0, pf, LRELU_SLOPE * pf)
        p = pf.astype(p_ref.dtype)

    acc = jnp.dot(p, w_ref[...], preferred_element_type=jnp.float32)  # (tm, Cop) f32

    if with_stats:
        step = pl.program_id(0)

        @pl.when(step == 0)
        def _():
            sum_ref[...] = jnp.zeros_like(sum_ref)
            sumsq_ref[...] = jnp.zeros_like(sumsq_ref)

        # Mask rows that belong to the M padding so they do not pollute the
        # BatchNorm batch statistics.
        rows = jax.lax.broadcasted_iota(jnp.int32, (tm, 1), 0) + step * tm
        mask = (rows < m_true).astype(jnp.float32)
        am = acc * mask
        sum_ref[...] += jnp.sum(am, axis=0, keepdims=True)
        sumsq_ref[...] += jnp.sum(am * acc, axis=0, keepdims=True)

    y = acc
    if add_bias:
        y = y + b_ref[...]
    if post_lrelu:
        y = jnp.where(y >= 0, y, LRELU_SLOPE * y)
    o_ref[...] = y.astype(o_ref.dtype)


# ------------------------------ layer wrapper --------------------------------

def _extract_patches_nhwc(xp, k, stride):
    """xp: padded NHWC.  Returns (M, k*k*C) patches ordered (kh, kw, c)."""
    B, Hp, Wp, C = xp.shape
    Hout = (Hp - k) // stride + 1
    Wout = (Wp - k) // stride + 1
    taps = []
    for kh in range(k):
        for kw in range(k):
            taps.append(xp[:, kh:kh + (Hout - 1) * stride + 1:stride,
                            kw:kw + (Wout - 1) * stride + 1:stride, :])
    patches = jnp.concatenate(taps, axis=-1)          # (B, Hout, Wout, k*k*C)
    return patches.reshape(B * Hout * Wout, k * k * C), Hout, Wout


def conv4x4_pallas(x_nhwc, w, bias, *, stride, padding, pad_mode,
                   pre_scale=None, pre_shift=None, post_lrelu=False,
                   with_stats=False, out_dtype=jnp.bfloat16):
    """Fused [prev-BN+LReLU] -> Conv2d(4x4) -> [bias] -> [LReLU] -> [BN stats].

    x_nhwc is (B, H, W, Cin); returns (y_nhwc, sum_c, sumsq_c) where the stats
    (per-channel sum / sum-of-squares of the raw conv output over N*H*W) are
    None unless with_stats.
    """
    B, H, W, Cin = x_nhwc.shape
    Cout = w.shape[0]
    k = w.shape[2]

    pads = ((0, 0), (padding, padding), (padding, padding), (0, 0))
    xp = jnp.pad(x_nhwc, pads, mode="reflect" if pad_mode == "reflect" else "constant")
    patches, Hout, Wout = _extract_patches_nhwc(xp, k, stride)     # (M, K)
    M, K = patches.shape

    Kp = _round_up(K, LANE)
    Cop = _round_up(Cout, LANE)
    if M <= LANE:
        tm = LANE
    else:
        tiles = max(2, pl.cdiv(M, MAX_TM))             # >=2 grid steps (megacore)
        tm = min(MAX_TM, _round_up(pl.cdiv(M, tiles), LANE))
    Mp = _round_up(M, tm)

    slab = jnp.pad(patches.astype(jnp.bfloat16), ((0, Mp - M), (0, Kp - K)))
    wm = w.transpose(2, 3, 1, 0).reshape(K, Cout).astype(jnp.bfloat16)
    wm = jnp.pad(wm, ((0, Kp - K), (0, Cop - Cout)))   # zero pad -> no matmul effect

    if bias is None:
        b_p = jnp.zeros((1, Cop), jnp.float32)
    else:
        b_p = jnp.pad(bias.astype(jnp.float32), (0, Cop - Cout)).reshape(1, Cop)

    has_pre = pre_scale is not None
    if has_pre:
        ps = jnp.pad(jnp.tile(pre_scale.astype(jnp.float32), k * k), (0, Kp - K)).reshape(1, Kp)
        pb = jnp.pad(jnp.tile(pre_shift.astype(jnp.float32), k * k), (0, Kp - K)).reshape(1, Kp)
    else:
        ps = jnp.zeros((1, Kp), jnp.float32)
        pb = jnp.zeros((1, Kp), jnp.float32)

    out_shapes = [jax.ShapeDtypeStruct((Mp, Cop), out_dtype)]
    out_specs = [pl.BlockSpec((tm, Cop), lambda i: (i, 0))]
    if with_stats:
        out_shapes += [jax.ShapeDtypeStruct((1, Cop), jnp.float32)] * 2
        out_specs += [pl.BlockSpec((1, Cop), lambda i: (0, 0)),
                      pl.BlockSpec((1, Cop), lambda i: (0, 0))]

    kernel = functools.partial(
        _conv_kernel, tm=tm, m_true=M, has_pre=has_pre,
        add_bias=bias is not None, post_lrelu=post_lrelu, with_stats=with_stats)

    res = pl.pallas_call(
        kernel,
        out_shape=out_shapes,
        grid_spec=pltpu.PrefetchScalarGridSpec(
            num_scalar_prefetch=0,
            grid=(Mp // tm,),
            in_specs=[
                pl.BlockSpec((tm, Kp), lambda i: (i, 0)),
                pl.BlockSpec((Kp, Cop), lambda i: (0, 0)),
                pl.BlockSpec((1, Kp), lambda i: (0, 0)),
                pl.BlockSpec((1, Kp), lambda i: (0, 0)),
                pl.BlockSpec((1, Cop), lambda i: (0, 0)),
            ],
            out_specs=out_specs,
        ),
        compiler_params=pltpu.CompilerParams(
            # Stats accumulate across the M axis -> must be sequential.
            dimension_semantics=("arbitrary",) if with_stats else ("parallel",),
            vmem_limit_bytes=32 * 1024 * 1024,
        ),
    )(slab, wm, ps, pb, b_p)

    y = res[0][:M, :Cout].reshape(B, Hout, Wout, Cout)
    if with_stats:
        return y, res[1][0, :Cout], res[2][0, :Cout]
    return y, None, None


# --------------------------- parameters & forward ----------------------------

def init_params(key, image_channels=3, feature_dim_last=8, num_layers=3):
    feature_dims = [feature_dim_last * min(2 ** i, 8) for i in range(num_layers + 1)]
    keys = iter(jax.random.split(key, 2 * (len(feature_dims) + 2)))

    def uconv(k, cout, cin):
        bound = 1.0 / jnp.sqrt(float(cin * 16))
        return jax.random.uniform(k, (cout, cin, 4, 4), jnp.float32, -bound, bound)

    def ubias(k, cout, cin):
        bound = 1.0 / jnp.sqrt(float(cin * 16))
        return jax.random.uniform(k, (cout,), jnp.float32, -bound, bound)

    params = {
        "conv0_w": uconv(next(keys), feature_dims[0], image_channels),
        "conv0_b": ubias(next(keys), feature_dims[0], image_channels),
        "blocks": [],
    }
    in_ch = feature_dims[0]
    for fd in feature_dims[1:]:
        stride = 1 if fd == feature_dims[-1] else 2
        params["blocks"].append({
            "w": uconv(next(keys), fd, in_ch),               # CNNBlock conv: bias=False
            "gamma": jnp.ones((fd,), jnp.float32),           # BatchNorm2d default init
            "beta": jnp.zeros((fd,), jnp.float32),
            "stride": stride,
        })
        in_ch = fd
    params["convf_w"] = uconv(next(keys), 1, in_ch)
    params["convf_b"] = ubias(next(keys), 1, in_ch)
    return params


def discriminator_forward(params, x_nchw):
    x = jnp.transpose(x_nchw, (0, 2, 3, 1))                  # NCHW -> NHWC once

    # Conv(image_channels -> f0, s=2, zero pad, bias) + LeakyReLU (fused).
    act, _, _ = conv4x4_pallas(
        x, params["conv0_w"], params["conv0_b"],
        stride=2, padding=1, pad_mode="zeros",
        post_lrelu=True, out_dtype=jnp.bfloat16)

    # CNNBlocks: Conv(reflect, no bias) -> BatchNorm(train stats) -> LeakyReLU.
    # Each conv kernel emits per-channel sum/sumsq of its own raw output; the
    # resulting BN + LeakyReLU is folded into the *next* conv kernel's patch
    # load (reflect padding and the per-channel affine commute elementwise).
    pre_scale = pre_shift = None
    for blk in params["blocks"]:
        y, s, ss = conv4x4_pallas(
            act, blk["w"], None, stride=blk["stride"], padding=1,
            pad_mode="reflect", pre_scale=pre_scale, pre_shift=pre_shift,
            with_stats=True, out_dtype=jnp.bfloat16)
        m = float(y.shape[0] * y.shape[1] * y.shape[2])       # N*H*W
        mean = s / m
        var = jnp.maximum(ss / m - mean * mean, 0.0)          # biased (train-mode) var
        inv = jax.lax.rsqrt(var + BN_EPS)
        pre_scale = blk["gamma"] * inv
        pre_shift = blk["beta"] - mean * pre_scale
        act = y                                               # raw pre-BN activation

    # Final Conv(in_ch -> 1, s=1, reflect, bias), no activation; the last
    # block's BN + LeakyReLU is applied here as the fused pre-op.
    out, _, _ = conv4x4_pallas(
        act, params["convf_w"], params["convf_b"],
        stride=1, padding=1, pad_mode="reflect",
        pre_scale=pre_scale, pre_shift=pre_shift,
        post_lrelu=False, out_dtype=jnp.float32)

    return jnp.transpose(out, (0, 3, 1, 2))                   # back to NCHW


if __name__ == "__main__":
    key = jax.random.PRNGKey(0)
    kx, kp = jax.random.split(key)
    image_channels = 3                                        # args.image_channels
    # Small shapes: B=2, C=3, 32x32; feature_dim_last=8 keeps channels tiny.
    x = jax.random.normal(kx, (2, image_channels, 32, 32), jnp.float32)
    params = init_params(kp, image_channels=image_channels,
                         feature_dim_last=8, num_layers=3)
    out = discriminator_forward(params, x)
    out = jax.block_until_ready(out)
    # 32 -> 16 -> 8 -> 4 -> 3 -> 2 spatially, 1 output channel (PatchGAN logits)
    assert out.shape == (2, 1, 2, 2), out.shape
    assert bool(jnp.all(jnp.isfinite(out)))
    print("KERNEL_OK")
</pallas_src>

<mosaic_0001>
module attributes {stable_mosaic.version = 11 : i64} {
  func.func @_conv_kernel(%arg0: i32, %arg1: memref<256x128xbf16, #tpu.memory_space<vmem>>, %arg2: memref<128x128xbf16, #tpu.memory_space<vmem>>, %arg3: memref<1x128xf32, #tpu.memory_space<vmem>>, %arg4: memref<1x128xf32, #tpu.memory_space<vmem>>, %arg5: memref<1x128xf32, #tpu.memory_space<vmem>>, %arg6: memref<256x128xbf16, #tpu.memory_space<vmem>>) attributes {dimension_semantics = [#tpu.dimension_semantics<parallel>], iteration_bounds = array<i64: 2>, scalar_prefetch = 0 : i64, scratch_operands = 0 : i64, tpu.core_type = #tpu.core_type<tc>, window_params = [{transform_indices = @transform_0, window_bounds = array<i64: 256, 128>}, {pipeline_mode = #tpu.pipeline_mode<synchronous>, transform_indices = @transform_1, window_bounds = array<i64: 128, 128>}, {pipeline_mode = #tpu.pipeline_mode<synchronous>, transform_indices = @transform_2, window_bounds = array<i64: 1, 128>}, {pipeline_mode = #tpu.pipeline_mode<synchronous>, transform_indices = @transform_3, window_bounds = array<i64: 1, 128>}, {pipeline_mode = #tpu.pipeline_mode<synchronous>, transform_indices = @transform_4, window_bounds = array<i64: 1, 128>}, {transform_indices = @transform_5, window_bounds = array<i64: 256, 128>}]} {
    %c0 = arith.constant 0 : index
    %c0_0 = arith.constant 0 : index
    %0 = vector.load %arg1[%c0, %c0_0] : memref<256x128xbf16, #tpu.memory_space<vmem>>, vector<256x128xbf16>
    %c0_1 = arith.constant 0 : index
    %c0_2 = arith.constant 0 : index
    %1 = vector.load %arg2[%c0_1, %c0_2] : memref<128x128xbf16, #tpu.memory_space<vmem>>, vector<128x128xbf16>
    %cst = arith.constant dense<0.000000e+00> : vector<256x128xf32>
    %2 = tpu.matmul %0, %1, %cst {dimension_numbers = #tpu.dot_dimension_numbers<[1], [0], [0], [1], [0, 0, 1, 1], [], []>} : vector<256x128xbf16>, vector<128x128xbf16>, vector<256x128xf32> -> vector<256x128xf32>
    %c0_3 = arith.constant 0 : index
    %c0_4 = arith.constant 0 : index
    %3 = vector.load %arg5[%c0_3, %c0_4] : memref<1x128xf32, #tpu.memory_space<vmem>>, vector<1x128xf32>
    %4 = vector.broadcast %3 : vector<1x128xf32> to vector<256x128xf32>
    %5 = arith.addf %2, %4 : vector<256x128xf32>
    %cst_5 = arith.constant 0.000000e+00 : f32
    %6 = vector.broadcast %cst_5 : f32 to vector<256x128xf32>
    %7 = arith.cmpf oge, %5, %6 : vector<256x128xf32>
    %cst_6 = arith.constant 2.000000e-01 : f32
    %8 = vector.broadcast %cst_6 : f32 to vector<256x128xf32>
    %9 = arith.mulf %8, %5 : vector<256x128xf32>
    %10 = arith.select %7, %5, %9 : vector<256x128xi1>, vector<256x128xf32>
    %11 = arith.truncf %10 : vector<256x128xf32> to vector<256x128xbf16>
    %c0_7 = arith.constant 0 : index
    %c0_8 = arith.constant 0 : index
    %12 = vector.load %arg6[%c0_7, %c0_8] : memref<256x128xbf16, #tpu.memory_space<vmem>>, vector<256x128xbf16>
    tpu.vector_store %arg6[%c0_7, %c0_8], %11 {strides = array<i32>} : memref<256x128xbf16, #tpu.memory_space<vmem>>, vector<256x128xbf16>,
    return
  }
  func.func @transform_0(%arg0: i32) -> (i32, i32) {
    %c0_i32 = arith.constant 0 : i32
    %c0_i32_0 = arith.constant 0 : i32
    return %arg0, %c0_i32 : i32, i32
  }
  func.func @transform_1(%arg0: i32) -> (i32, i32) {
    %c0_i32 = arith.constant 0 : i32
    %c0_i32_0 = arith.constant 0 : i32
    %c0_i32_1 = arith.constant 0 : i32
    return %c0_i32, %c0_i32_0 : i32, i32
  }
  func.func @transform_2(%arg0: i32) -> (i32, i32) {
    %c0_i32 = arith.constant 0 : i32
    %c0_i32_0 = arith.constant 0 : i32
    %c0_i32_1 = arith.constant 0 : i32
    return %c0_i32, %c0_i32_0 : i32, i32
  }
  func.func @transform_3(%arg0: i32) -> (i32, i32) {
    %c0_i32 = arith.constant 0 : i32
    %c0_i32_0 = arith.constant 0 : i32
    %c0_i32_1 = arith.constant 0 : i32
    return %c0_i32, %c0_i32_0 : i32, i32
  }
  func.func @transform_4(%arg0: i32) -> (i32, i32) {
    %c0_i32 = arith.constant 0 : i32
    %c0_i32_0 = arith.constant 0 : i32
    %c0_i32_1 = arith.constant 0 : i32
    return %c0_i32, %c0_i32_0 : i32, i32
  }
  func.func @transform_5(%arg0: i32) -> (i32, i32) {
    %c0_i32 = arith.constant 0 : i32
    %c0_i32_0 = arith.constant 0 : i32
    return %arg0, %c0_i32 : i32, i32
  }
}

</mosaic_0001>

<llo_original>
// kernel: tpu_custom_call.1
$region0: #{tpu_custom_call.1}
  #allocation0 [shape = 'u32[]', space=smem, size = 0x4, offset = 0x4, fixed_abs, tag = 'smem constant byte address 0x4 - core index']
  #allocation1 [shape = 'u32[144,128]{1,0:T(1,128)}', space=vmem, size = 0x12000, scoped, tag = 'internal scratch']
  %s0 = inlined_call_operand.hbm [shape: bf16[512,128], index: 0, kind: input, shape index: {}]
  %s1 = inlined_call_operand.hbm [shape: bf16[128,128], index: 1, kind: input, shape index: {}]
  %s2 = inlined_call_operand.vmem [shape: f32[1,128], index: 2, kind: input, shape index: {}]
  %s3 = inlined_call_operand.vmem [shape: f32[1,128], index: 3, kind: input, shape index: {}]
  %s4 = inlined_call_operand.vmem [shape: f32[1,128], index: 4, kind: input, shape index: {}]
  %s5 = inlined_call_operand.hbm [shape: bf16[512,128], index: 5, kind: output, shape index: {}]
  %s6 = sld [smem:[#allocation0]]
  $region61: #{tpu_custom_call.1} parent=0
    _
  %s8 = ssub.s32 1, %s6
  %s9 = scalar_select 0, %s8, %s6
  $region1: #{tpu_custom_call.1} parent=0
    #allocation2 [shape = 'u8[131072]{0}', space=vmem, size = 0x20000, scoped, tag = 'input window, operand 0']
    #allocation3 [shape = 's32[2]{0}', space=sflag, size = 0x8, scoped, tag = 'scoped memory for tpu_custom_call.1']
    #allocation4 [shape = 's32[2]{0}', space=sflag, size = 0x8, scoped, tag = 'scoped memory for tpu_custom_call.1']
    #allocation5 [shape = 'u8[32768]{0}', space=vmem, size = 0x8000, scoped, tag = 'input window, operand 1, single buffered']
    #allocation6 [shape = 's32[1]{0}', space=sflag, size = 0x4, scoped, tag = 'scoped memory for tpu_custom_call.1']
    #allocation7 [shape = 'u8[131072]{0}', space=vmem, size = 0x20000, scoped, tag = 'output window, operand 0']
    %10 = vsyncpa [#allocation3], 0
    %s11 = scalar_lea.sflag [#allocation3], 1
    %12 = vsyncpa %s11, 0
    %13 = vsyncpa [#allocation6], 0
    %14 = vsyncpa [#allocation4], 0
    %s15 = scalar_lea.sflag [#allocation4], 1
    %16 = vsyncpa %s15, 0
    loop: start=0, step=1, limit=4
    $region2: #{tpu_custom_call.1} parent=1 // loop_pre_header
      _
    $region3: #{tpu_custom_call.1} parent=1 // loop_header
      %s18 = sphi 0, %s22
      %p19 = scmp.ge.s32.totalorder %s18, 4
      %s28 = sphi 0, %s30
      %s31 = sphi 0, %s28
      %s32 = sphi 0, %s31
      %s48 = sphi 0, %s32
      %s52 = sphi 0, %s52
      %s54 = sphi 0, %s52
      %s55 = sphi 0, %s54
      %s69 = sphi 0, %s55
      %s73 = sphi 0, %s73
      %s75 = sphi 0, %s73
      %s76 = sphi 0, %s75
      %s90 = sphi 0, %s76
      %s94 = sphi 0, %s94
      %s96 = sphi 0, %s94
      %s97 = sphi 0, %s96
      %s111 = sphi 0, %s97
      %s115 = sphi 0, %s115
      %s117 = sphi 0, %s115
      %s118 = sphi 0, %s117
      %s132 = sphi 0, %s118
      %s138 = sphi 0, %s140
      %s141 = sphi 0, %s138
      %s142 = sphi 0, %s141
      %s158 = sphi 0, %s142
    $region4: #{tpu_custom_call.1} parent=1 // loop_header_branch
      %21 = sbr.rel (%p19) target = $region8
    $region5: #{tpu_custom_call.1} parent=1 // loop_body
      %s23 = ssub.s32 %s18, 1
      %s24 = ssub.s32 %s18, 2
      %s25 = sadd.s32 %s18, 1
      %s26 = ssub.s32 %s18, %s25
      %p27 = scmp.eq.s32.totalorder %s26, 0
      %s29 = sadd.s32 %s28, 1
      %s30 = scalar_select %p27, %s28, %s29
      %p33 = pneg %p27
      %p34 = scmp.eq.s32.totalorder %s18, 1
      %p35 = por %p33, %p34
      %p36 = scmp.ne.s32.totalorder %s28, %s31
      %p37 = scmp.eq.s32.totalorder %s18, 0
      %p38 = por %p36, %p37
      %p39 = scmp.ne.s32.totalorder %s28, %s31
      %p40 = scmp.eq.s32.totalorder %s23, 1
      %p41 = por %p39, %p40
      %p42 = scmp.ne.s32.totalorder %s31, %s32
      %p43 = scmp.eq.s32.totalorder %s23, 0
      %p44 = por %p42, %p43
      %p45 = scmp.ne.s32.totalorder %s31, %s32
      %p46 = scmp.eq.s32.totalorder %s24, 1
      %p47 = por %p45, %p46
      %p49 = scmp.ne.s32.totalorder %s32, %s48
      %p50 = scmp.eq.s32.totalorder %s24, 0
      %p51 = por %p49, %p50
      %s53 = sadd.s32 %s52, 1
      %p56 = scmp.eq.s32.totalorder %s18, 1
      %p57 = scmp.ne.s32.totalorder %s52, %s54
      %p58 = scmp.eq.s32.totalorder %s18, 0
      %p59 = por %p57, %p58
      %p60 = scmp.ne.s32.totalorder %s52, %s54
      %p61 = scmp.eq.s32.totalorder %s23, 1
      %p62 = por %p60, %p61
      %p63 = scmp.ne.s32.totalorder %s54, %s55
      %p64 = scmp.eq.s32.totalorder %s23, 0
      %p65 = por %p63, %p64
      %p66 = scmp.ne.s32.totalorder %s54, %s55
      %p67 = scmp.eq.s32.totalorder %s24, 1
      %p68 = por %p66, %p67
      %p70 = scmp.ne.s32.totalorder %s55, %s69
      %p71 = scmp.eq.s32.totalorder %s24, 0
      %p72 = por %p70, %p71
      %s74 = sadd.s32 %s73, 1
      %p77 = scmp.eq.s32.totalorder %s18, 1
      %p78 = scmp.ne.s32.totalorder %s73, %s75
      %p79 = scmp.eq.s32.totalorder %s18, 0
      %p80 = por %p78, %p79
      %p81 = scmp.ne.s32.totalorder %s73, %s75
      %p82 = scmp.eq.s32.totalorder %s23, 1
      %p83 = por %p81, %p82
      %p84 = scmp.ne.s32.totalorder %s75, %s76
      %p85 = scmp.eq.s32.totalorder %s23, 0
      %p86 = por %p84, %p85
      %p87 = scmp.ne.s32.totalorder %s75, %s76
      %p88 = scmp.eq.s32.totalorder %s24, 1
      %p89 = por %p87, %p88
      %p91 = scmp.ne.s32.totalorder %s76, %s90
      %p92 = scmp.eq.s32.totalorder %s24, 0
      %p93 = por %p91, %p92
      %s95 = sadd.s32 %s94, 1
      %p98 = scmp.eq.s32.totalorder %s18, 1
      %p99 = scmp.ne.s32.totalorder %s94, %s96
      %p100 = scmp.eq.s32.totalorder %s18, 0
      %p101 = por %p99, %p100
      %p102 = scmp.ne.s32.totalorder %s94, %s96
      %p103 = scmp.eq.s32.totalorder %s23, 1
      %p104 = por %p102, %p103
      %p105 = scmp.ne.s32.totalorder %s96, %s97
      %p106 = scmp.eq.s32.totalorder %s23, 0
      %p107 = por %p105, %p106
      %p108 = scmp.ne.s32.totalorder %s96, %s97
      %p109 = scmp.eq.s32.totalorder %s24, 1
      %p110 = por %p108, %p109
      %p112 = scmp.ne.s32.totalorder %s97, %s111
      %p113 = scmp.eq.s32.totalorder %s24, 0
      %p114 = por %p112, %p113
      %s116 = sadd.s32 %s115, 1
      %p119 = scmp.eq.s32.totalorder %s18, 1
      %p120 = scmp.ne.s32.totalorder %s115, %s117
      %p121 = scmp.eq.s32.totalorder %s18, 0
      %p122 = por %p120, %p121
      %p123 = scmp.ne.s32.totalorder %s115, %s117
      %p124 = scmp.eq.s32.totalorder %s23, 1
      %p125 = por %p123, %p124
      %p126 = scmp.ne.s32.totalorder %s117, %s118
      %p127 = scmp.eq.s32.totalorder %s23, 0
      %p128 = por %p126, %p127
      %p129 = scmp.ne.s32.totalorder %s117, %s118
      %p130 = scmp.eq.s32.totalorder %s24, 1
      %p131 = por %p129, %p130
      %p133 = scmp.ne.s32.totalorder %s118, %s132
      %p134 = scmp.eq.s32.totalorder %s24, 0
      %p135 = por %p133, %p134
      %s136 = ssub.s32 %s18, %s25
      %p137 = scmp.eq.s32.totalorder %s136, 0
      %s139 = sadd.s32 %s138, 1
      %s140 = scalar_select %p137, %s138, %s139
      %p143 = pneg %p137
      %p144 = scmp.eq.s32.totalorder %s18, 1
      %p145 = por %p143, %p144
      %p146 = scmp.ne.s32.totalorder %s138, %s141
      %p147 = scmp.eq.s32.totalorder %s18, 0
      %p148 = por %p146, %p147
      %p149 = scmp.ne.s32.totalorder %s138, %s141
      %p150 = scmp.eq.s32.totalorder %s23, 1
      %p151 = por %p149, %p150
      %p152 = scmp.ne.s32.totalorder %s141, %s142
      %p153 = scmp.eq.s32.totalorder %s23, 0
      %p154 = por %p152, %p153
      %p155 = scmp.ne.s32.totalorder %s141, %s142
      %p156 = scmp.eq.s32.totalorder %s24, 1
      %p157 = por %p155, %p156
      %p159 = scmp.ne.s32.totalorder %s142, %s158
      %p160 = scmp.eq.s32.totalorder %s24, 0
      %p161 = por %p159, %p160
      %p162 = scmp.le.s32.totalorder 1, %s18
      %p163 = scmp.lt.s32.totalorder %s18, 3
      %p164 = pnand %p162, %p163
      %p165 = pneg %p164
      // Predicated region
      $region9: #{tpu_custom_call.1} parent=5 // pred_check
        _
      $region10: #{tpu_custom_call.1} parent=5 // pred_check_branch
        %167 = sbr.rel (%p164) target = $region12
      $region11: #{tpu_custom_call.1} parent=5 // pred_region
        %s168 = ssub.s32 %s18, 1
        // Predicated region
        $region13: #{tpu_custom_call.1} parent=11 // pred_check
          %p169 = pneg %p65
        $region14: #{tpu_custom_call.1} parent=11 // pred_check_branch
          %171 = sbr.rel (%p169) target = $region16
        $region15: #{tpu_custom_call.1} parent=11 // pred_region
          %s173 = ssub.s32 1024, 1024
          %174 = vsyncadd [#allocation6], %s173
          %s175 = sshll.u32 [#allocation5], 4
          %s176 = int_to_ptr.vmem [resolvable:$true] %s175
          %181 = dma.hbm_to_vmem [thread:$0]  %s1, 1024, %s176, [#allocation6], 64, 64, 4
        $region16: #{tpu_custom_call.1} parent=11 // pred_fallthru
          _
        // Predicated region
        $region17: #{tpu_custom_call.1} parent=11 // pred_check
          %p182 = pneg %p86
        $region18: #{tpu_custom_call.1} parent=11 // pred_check_branch
          %184 = sbr.rel (%p182) target = $region20
        $region19: #{tpu_custom_call.1} parent=11 // pred_region
          _
        $region20: #{tpu_custom_call.1} parent=11 // pred_fallthru
          _
        // Predicated region
        $region21: #{tpu_custom_call.1} parent=11 // pred_check
          %p185 = pneg %p107
        $region22: #{tpu_custom_call.1} parent=11 // pred_check_branch
          %187 = sbr.rel (%p185) target = $region24
        $region23: #{tpu_custom_call.1} parent=11 // pred_region
          _
        $region24: #{tpu_custom_call.1} parent=11 // pred_fallthru
          _
        // Predicated region
        $region25: #{tpu_custom_call.1} parent=11 // pred_check
          %p188 = pneg %p128
        $region26: #{tpu_custom_call.1} parent=11 // pred_check_branch
          %190 = sbr.rel (%p188) target = $region28
        $region27: #{tpu_custom_call.1} parent=11 // pred_region
          _
        $region28: #{tpu_custom_call.1} parent=11 // pred_fallthru
          _
      $region12: #{tpu_custom_call.1} parent=5 // pred_fallthru
        _
      %p191 = scmp.lt.s32.totalorder %s18, 2
      // Predicated region
      $region29: #{tpu_custom_call.1} parent=5 // pred_check
        %p192 = pneg %p191
      $region30: #{tpu_custom_call.1} parent=5 // pred_check_branch
        %194 = sbr.rel (%p192) target = $region32
      $region31: #{tpu_custom_call.1} parent=5 // pred_region
        // Predicated region
        $region33: #{tpu_custom_call.1} parent=31 // pred_check
          %p195 = pneg %p38
        $region34: #{tpu_custom_call.1} parent=31 // pred_check_branch
          %197 = sbr.rel (%p195) target = $region36
        $region35: #{tpu_custom_call.1} parent=31 // pred_region
          %s198 = sand.u32 %s28, 1
          %s199 = scalar_lea.sflag [#allocation3], %s198
          %s200 = sand.u32 %s28, 1
          %s201 = smul.addr %s200, 128
          %s202 = scalar_lea.vmem [#allocation2], %s201
          %s203 = smul.u32 32, %s18
          %s205 = ssub.s32 2048, 2048
          %206 = vsyncadd %s199, %s205
          %s207 = smul.addr %s203, 64
          %s208 = scalar_lea.hbm %s0, %s207
          %s209 = sshll.u32 %s202, 4
          %s210 = int_to_ptr.vmem [resolvable:$true] %s209
          %215 = dma.hbm_to_vmem [thread:$0]  %s208, 2048, %s210, %s199, 64, 64, 4
        $region36: #{tpu_custom_call.1} parent=31 // pred_fallthru
          _
      $region32: #{tpu_custom_call.1} parent=5 // pred_fallthru
        _
      %p216 = scmp.le.s32.totalorder 1, %s18
      %p217 = scmp.lt.s32.totalorder %s18, 3
      %p218 = pnand %p216, %p217
      %p219 = pneg %p218
      // Predicated region
      $region37: #{tpu_custom_call.1} parent=5 // pred_check
        _
      $region38: #{tpu_custom_call.1} parent=5 // pred_check_branch
        %221 = sbr.rel (%p218) target = $region40
      $region39: #{tpu_custom_call.1} parent=5 // pred_region
        %s222 = ssub.s32 %s18, 1
        %s223 = sand.u32 %s31, 1
        %s224 = scalar_lea.sflag [#allocation3], %s223
        %s225 = sand.u32 %s31, 1
        %s226 = smul.addr %s225, 128
        %s227 = scalar_lea.vmem [#allocation2], %s226
        // Predicated region
        $region41: #{tpu_custom_call.1} parent=39 // pred_check
          %p228 = pneg %p44
        $region42: #{tpu_custom_call.1} parent=39 // pred_check_branch
          %230 = sbr.rel (%p228) target = $region44
        $region43: #{tpu_custom_call.1} parent=39 // pred_region
          %231 = dma.done %s224, 2048
        $region44: #{tpu_custom_call.1} parent=39 // pred_fallthru
          _
        // Predicated region
        $region45: #{tpu_custom_call.1} parent=39 // pred_check
          %p232 = pneg %p65
        $region46: #{tpu_custom_call.1} parent=39 // pred_check_branch
          %234 = sbr.rel (%p232) target = $region48
        $region47: #{tpu_custom_call.1} parent=39 // pred_region
          %235 = dma.done [#allocation6], 1024
        $region48: #{tpu_custom_call.1} parent=39 // pred_fallthru
          _
        %s236 = sand.u32 %s31, 1
        %s237 = scalar_lea.sflag [#allocation3], %s236
        %s238 = sand.u32 %s31, 1
        %s239 = smul.addr %s238, 128
        %s240 = scalar_lea.vmem [#allocation2], %s239
        %p241 = pneg %p44
        %p242 = pneg %p41
        %p243 = pneg %p65
        %p244 = pneg %p62
        %p245 = pneg %p86
        %p246 = pneg %p83
        %p247 = pneg %p107
        %p248 = pneg %p104
        %p249 = pneg %p128
        %p250 = pneg %p125
        %p251 = pneg %p154
        %p252 = pneg %p151
        %s253 = sand.u32 %s141, 1
        %s254 = scalar_lea.sflag [#allocation4], %s253
        %s255 = sand.u32 %s141, 1
        %s256 = smul.addr %s255, 128
        %s257 = scalar_lea.vmem [#allocation7], %s256
        %s258 = smul.u32 32, %s23
        %s259 = smul.u32 32, %s23
        %v261 = vld [vmem:[%s227] sm:$0xf]
        %v262 = vld [vmem:[%s227 + $0x4] sm:$0xf]
        %v263 = vld [vmem:[%s227 + $0x8] sm:$0xf]
        %v264 = vld [vmem:[%s227 + $0xc] sm:$0xf]
        %v265 = vld [vmem:[%s227 + $0x10] sm:$0xf]
        %v266 = vld [vmem:[%s227 + $0x14] sm:$0xf]
        %v267 = vld [vmem:[%s227 + $0x18] sm:$0xf]
        %v268 = vld [vmem:[%s227 + $0x1c] sm:$0xf]
        %v269 = vld [vmem:[%s227 + $0x20] sm:$0xf]
        %v270 = vld [vmem:[%s227 + $0x24] sm:$0xf]
        %v271 = vld [vmem:[%s227 + $0x28] sm:$0xf]
        %v272 = vld [vmem:[%s227 + $0x2c] sm:$0xf]
        %v273 = vld [vmem:[%s227 + $0x30] sm:$0xf]
        %v274 = vld [vmem:[%s227 + $0x34] sm:$0xf]
        %v275 = vld [vmem:[%s227 + $0x38] sm:$0xf]
        %v276 = vld [vmem:[%s227 + $0x3c] sm:$0xf]
        %v277 = vld [vmem:[%s227 + $0x40] sm:$0xf]
        %v278 = vld [vmem:[%s227 + $0x44] sm:$0xf]
        %v279 = vld [vmem:[%s227 + $0x48] sm:$0xf]
        %v280 = vld [vmem:[%s227 + $0x4c] sm:$0xf]
        %v281 = vld [vmem:[%s227 + $0x50] sm:$0xf]
        %v282 = vld [vmem:[%s227 + $0x54] sm:$0xf]
        %v283 = vld [vmem:[%s227 + $0x58] sm:$0xf]
        %v284 = vld [vmem:[%s227 + $0x5c] sm:$0xf]
        %v285 = vld [vmem:[%s227 + $0x60] sm:$0xf]
        %v286 = vld [vmem:[%s227 + $0x64] sm:$0xf]
        %v287 = vld [vmem:[%s227 + $0x68] sm:$0xf]
        %v288 = vld [vmem:[%s227 + $0x6c] sm:$0xf]
        %v289 = vld [vmem:[%s227 + $0x70] sm:$0xf]
        %v290 = vld [vmem:[%s227 + $0x74] sm:$0xf]
        %v291 = vld [vmem:[%s227 + $0x78] sm:$0xf]
        %v292 = vld [vmem:[%s227 + $0x7c] sm:$0xf]
        %v293 = vld [vmem:[#allocation5] sm:$0xf]
        %v294 = vld [vmem:[#allocation5 + $0x4] sm:$0xf]
        %v295 = vld [vmem:[#allocation5 + $0x8] sm:$0xf]
        %v296 = vld [vmem:[#allocation5 + $0xc] sm:$0xf]
        %v297 = vld [vmem:[#allocation5 + $0x10] sm:$0xf]
        %v298 = vld [vmem:[#allocation5 + $0x14] sm:$0xf]
        %v299 = vld [vmem:[#allocation5 + $0x18] sm:$0xf]
        %v300 = vld [vmem:[#allocation5 + $0x1c] sm:$0xf]
        %v301 = vld [vmem:[#allocation5 + $0x20] sm:$0xf]
        %v302 = vld [vmem:[#allocation5 + $0x24] sm:$0xf]
        %v303 = vld [vmem:[#allocation5 + $0x28] sm:$0xf]
        %v304 = vld [vmem:[#allocation5 + $0x2c] sm:$0xf]
        %v305 = vld [vmem:[#allocation5 + $0x30] sm:$0xf]
        %v306 = vld [vmem:[#allocation5 + $0x34] sm:$0xf]
        %v307 = vld [vmem:[#allocation5 + $0x38] sm:$0xf]
        %v308 = vld [vmem:[#allocation5 + $0x3c] sm:$0xf]
        %v309 = vld [vmem:[%s4] sm:$0x1]
        %v311 = vlaneseq
        %v312 = vshrl.u32 %v311, 7
        %v313 = vsub.s32 0, %v312
        %v314 = vrot.slane %v309, %v313
        %v348 = vunpack.c.l.b16 %v261
        %v349 = vunpack.c.l.b16 %v262
        %v350 = vunpack.c.l.b16 %v263
        %v351 = vunpack.c.l.b16 %v264
        %v352 = vunpack.c.l.b16 %v265
        %v353 = vunpack.c.l.b16 %v266
        %v354 = vunpack.c.l.b16 %v267
        %v355 = vunpack.c.l.b16 %v268
        %v356 = vunpack.c.l.b16 %v269
        %v357 = vunpack.c.l.b16 %v270
        %v358 = vunpack.c.l.b16 %v271
        %v359 = vunpack.c.l.b16 %v272
        %v360 = vunpack.c.l.b16 %v273
        %v361 = vunpack.c.l.b16 %v274
        %v362 = vunpack.c.l.b16 %v275
        %v363 = vunpack.c.l.b16 %v276
        %v364 = vunpack.c.l.b16 %v277
        %v365 = vunpack.c.l.b16 %v278
        %v366 = vunpack.c.l.b16 %v279
        %v367 = vunpack.c.l.b16 %v280
        %v368 = vunpack.c.l.b16 %v281
        %v369 = vunpack.c.l.b16 %v282
        %v370 = vunpack.c.l.b16 %v283
        %v371 = vunpack.c.l.b16 %v284
        %v372 = vunpack.c.l.b16 %v285
        %v373 = vunpack.c.l.b16 %v286
        %v374 = vunpack.c.l.b16 %v287
        %v375 = vunpack.c.l.b16 %v288
        %v376 = vunpack.c.l.b16 %v289
        %v377 = vunpack.c.l.b16 %v290
        %v378 = vunpack.c.l.b16 %v291
        %v379 = vunpack.c.l.b16 %v292
        %v380 = vpack.c.b16 %v349, %v348
        %v381 = vpack.c.b16 %v351, %v350
        %v382 = vpack.c.b16 %v353, %v352
        %v383 = vpack.c.b16 %v355, %v354
        %v384 = vpack.c.b16 %v357, %v356
        %v385 = vpack.c.b16 %v359, %v358
        %v386 = vpack.c.b16 %v361, %v360
        %v387 = vpack.c.b16 %v363, %v362
        %v388 = vpack.c.b16 %v365, %v364
        %v389 = vpack.c.b16 %v367, %v366
        %v390 = vpack.c.b16 %v369, %v368
        %v391 = vpack.c.b16 %v371, %v370
        %v392 = vpack.c.b16 %v373, %v372
        %v393 = vpack.c.b16 %v375, %v374
        %v394 = vpack.c.b16 %v377, %v376
        %v395 = vpack.c.b16 %v379, %v378
        %v428 = vunpack.c.l.b16 %v293
        %v429 = vunpack.c.l.b16 %v294
        %v430 = vunpack.c.l.b16 %v295
        %v431 = vunpack.c.l.b16 %v296
        %v432 = vunpack.c.l.b16 %v297
        %v433 = vunpack.c.l.b16 %v298
        %v434 = vunpack.c.l.b16 %v299
        %v435 = vunpack.c.l.b16 %v300
        %v436 = vunpack.c.l.b16 %v301
        %v437 = vunpack.c.l.b16 %v302
        %v438 = vunpack.c.l.b16 %v303
        %v439 = vunpack.c.l.b16 %v304
        %v440 = vunpack.c.l.b16 %v305
        %v441 = vunpack.c.l.b16 %v306
        %v442 = vunpack.c.l.b16 %v307
        %v443 = vunpack.c.l.b16 %v308
        %v444 = vpack.c.b16 %v429, %v428
        %v445 = vpack.c.b16 %v431, %v430
        %v446 = vpack.c.b16 %v433, %v432
        %v447 = vpack.c.b16 %v435, %v434
        %v448 = vpack.c.b16 %v437, %v436
        %v449 = vpack.c.b16 %v439, %v438
        %v450 = vpack.c.b16 %v441, %v440
        %v451 = vpack.c.b16 %v443, %v442
        %460 = vmatprep.subr.bf16.mxu0 0
        %461 = vmatpush1.bf16.msra.mxu0 %v444
        %462 = vmatprep.subr.bf16.mxu0 0
        %463 = vmatpush1.bf16.msra.mxu0 %v445
        %464 = vmatprep.subr.bf16.mxu0 0
        %465 = vmatpush1.bf16.msra.mxu0 %v446
        %466 = vmatprep.subr.bf16.mxu0 0
        %467 = vmatpush1.bf16.msra.mxu0 %v447
        %468 = vmatprep.subr.bf16.mxu0 0
        %469 = vmatpush1.bf16.msra.mxu0 %v448
        %470 = vmatprep.subr.bf16.mxu0 0
        %471 = vmatpush1.bf16.msra.mxu0 %v449
        %472 = vmatprep.subr.bf16.mxu0 0
        %473 = vmatpush1.bf16.msra.mxu0 %v450
        %474 = vmatprep.subr.bf16.mxu0 0
        %475 = vmatpush1.bf16.msra.mxu0 %v451
        %476 = vmatprep.subr.bf16.mxu0 0
        %477 = vmatpush1.bf16.msra.mxu0 0
        %478 = vmatprep.subr.bf16.mxu0 0
        %479 = vmatpush1.bf16.msra.mxu0 0
        %480 = vmatprep.subr.bf16.mxu0 0
        %481 = vmatpush1.bf16.msra.mxu0 0
        %482 = vmatprep.subr.bf16.mxu0 0
        %483 = vmatpush1.bf16.msra.mxu0 0
        %484 = vmatprep.subr.bf16.mxu0 0
        %485 = vmatpush1.bf16.msra.mxu0 0
        %486 = vmatprep.subr.bf16.mxu0 0
        %487 = vmatpush1.bf16.msra.mxu0 0
        %488 = vmatprep.subr.bf16.mxu0 0
        %489 = vmatpush1.bf16.msra.mxu0 0
        %490 = vmatprep.subr.bf16.mxu0 0
        %491 = vmatpush1.bf16.msra.mxu0 0
        %492 = vmatprep.mubr.bf16.mxu0 0
        %493 = vmatmul.mubr.bf16.gmra.mrb[0].mxu0 %v380
        %v494 = vpop.f32.mrb[0].mxu0
        %v495 = vadd.f32 %v314, %v494
        %v496 = vpop.f32.mrb[0].mxu0
        %v497 = vpop.f32.mrb[0].mxu0
        %v498 = vadd.f32 %v314, %v497
        %v499 = vpop.f32.mrb[0].mxu0
        %500 = vmatprep.mubr.bf16.mxu0 0
        %501 = vmatmul.mubr.bf16.gmra.mrb[0].mxu0 %v381
        %v502 = vpop.f32.mrb[0].mxu0
        %v503 = vadd.f32 %v314, %v502
        %v504 = vpop.f32.mrb[0].mxu0
        %v505 = vpop.f32.mrb[0].mxu0
        %v506 = vadd.f32 %v314, %v505
        %v507 = vpop.f32.mrb[0].mxu0
        %508 = vmatprep.mubr.bf16.mxu0 0
        %509 = vmatmul.mubr.bf16.gmra.mrb[0].mxu0 %v382
        %v510 = vpop.f32.mrb[0].mxu0
        %v511 = vadd.f32 %v314, %v510
        %v512 = vpop.f32.mrb[0].mxu0
        %v513 = vpop.f32.mrb[0].mxu0
        %v514 = vadd.f32 %v314, %v513
        %v515 = vpop.f32.mrb[0].mxu0
        %516 = vmatprep.mubr.bf16.mxu0 0
        %517 = vmatmul.mubr.bf16.gmra.mrb[0].mxu0 %v383
        %v518 = vpop.f32.mrb[0].mxu0
        %v519 = vadd.f32 %v314, %v518
        %v520 = vpop.f32.mrb[0].mxu0
        %v521 = vpop.f32.mrb[0].mxu0
        %v522 = vadd.f32 %v314, %v521
        %v523 = vpop.f32.mrb[0].mxu0
        %524 = vmatprep.mubr.bf16.mxu0 0
        %525 = vmatmul.mubr.bf16.gmra.mrb[0].mxu0 %v384
        %v526 = vpop.f32.mrb[0].mxu0
        %v527 = vadd.f32 %v314, %v526
        %v528 = vpop.f32.mrb[0].mxu0
        %v529 = vpop.f32.mrb[0].mxu0
        %v530 = vadd.f32 %v314, %v529
        %v531 = vpop.f32.mrb[0].mxu0
        %532 = vmatprep.mubr.bf16.mxu0 0
        %533 = vmatmul.mubr.bf16.gmra.mrb[0].mxu0 %v385
        %v534 = vpop.f32.mrb[0].mxu0
        %v535 = vadd.f32 %v314, %v534
        %v536 = vpop.f32.mrb[0].mxu0
        %v537 = vpop.f32.mrb[0].mxu0
        %v538 = vadd.f32 %v314, %v537
        %v539 = vpop.f32.mrb[0].mxu0
        %540 = vmatprep.mubr.bf16.mxu0 0
        %541 = vmatmul.mubr.bf16.gmra.mrb[0].mxu0 %v386
        %v542 = vpop.f32.mrb[0].mxu0
        %v543 = vadd.f32 %v314, %v542
        %v544 = vpop.f32.mrb[0].mxu0
        %v545 = vpop.f32.mrb[0].mxu0
        %v546 = vadd.f32 %v314, %v545
        %v547 = vpop.f32.mrb[0].mxu0
        %548 = vmatprep.mubr.bf16.mxu0 0
        %549 = vmatmul.mubr.bf16.gmra.mrb[0].mxu0 %v387
        %v550 = vpop.f32.mrb[0].mxu0
        %v551 = vadd.f32 %v314, %v550
        %v552 = vpop.f32.mrb[0].mxu0
        %v553 = vpop.f32.mrb[0].mxu0
        %v554 = vadd.f32 %v314, %v553
        %v555 = vpop.f32.mrb[0].mxu0
        %556 = vmatprep.mubr.bf16.mxu0 0
        %557 = vmatmul.mubr.bf16.gmra.mrb[0].mxu0 %v388
        %v558 = vpop.f32.mrb[0].mxu0
        %v559 = vadd.f32 %v314, %v558
        %v560 = vpop.f32.mrb[0].mxu0
        %v561 = vpop.f32.mrb[0].mxu0
        %v562 = vadd.f32 %v314, %v561
        %v563 = vpop.f32.mrb[0].mxu0
        %564 = vmatprep.mubr.bf16.mxu0 0
        %565 = vmatmul.mubr.bf16.gmra.mrb[0].mxu0 %v389
        %v566 = vpop.f32.mrb[0].mxu0
        %v567 = vadd.f32 %v314, %v566
        %v568 = vpop.f32.mrb[0].mxu0
        %v569 = vpop.f32.mrb[0].mxu0
        %v570 = vadd.f32 %v314, %v569
        %v571 = vpop.f32.mrb[0].mxu0
        %572 = vmatprep.mubr.bf16.mxu0 0
        %573 = vmatmul.mubr.bf16.gmra.mrb[0].mxu0 %v390
        %v574 = vpop.f32.mrb[0].mxu0
        %v575 = vadd.f32 %v314, %v574
        %v576 = vpop.f32.mrb[0].mxu0
        %v577 = vpop.f32.mrb[0].mxu0
        %v578 = vadd.f32 %v314, %v577
        %v579 = vpop.f32.mrb[0].mxu0
        %580 = vmatprep.mubr.bf16.mxu0 0
        %581 = vmatmul.mubr.bf16.gmra.mrb[0].mxu0 %v391
        %v582 = vpop.f32.mrb[0].mxu0
        %v583 = vadd.f32 %v314, %v582
        %v584 = vpop.f32.mrb[0].mxu0
        %v585 = vpop.f32.mrb[0].mxu0
        %v586 = vadd.f32 %v314, %v585
        %v587 = vpop.f32.mrb[0].mxu0
        %588 = vmatprep.mubr.bf16.mxu0 0
        %589 = vmatmul.mubr.bf16.gmra.mrb[0].mxu0 %v392
        %v590 = vpop.f32.mrb[0].mxu0
        %v591 = vadd.f32 %v314, %v590
        %v592 = vpop.f32.mrb[0].mxu0
        %v593 = vpop.f32.mrb[0].mxu0
        %v594 = vadd.f32 %v314, %v593
        %v595 = vpop.f32.mrb[0].mxu0
        %596 = vmatprep.mubr.bf16.mxu0 0
        %597 = vmatmul.mubr.bf16.gmra.mrb[0].mxu0 %v393
        %v598 = vpop.f32.mrb[0].mxu0
        %v599 = vadd.f32 %v314, %v598
        %v600 = vpop.f32.mrb[0].mxu0
        %v601 = vpop.f32.mrb[0].mxu0
        %v602 = vadd.f32 %v314, %v601
        %v603 = vpop.f32.mrb[0].mxu0
        %604 = vmatprep.mubr.bf16.mxu0 0
        %605 = vmatmul.mubr.bf16.gmra.mrb[0].mxu0 %v394
        %v606 = vpop.f32.mrb[0].mxu0
        %v607 = vadd.f32 %v314, %v606
        %v608 = vpop.f32.mrb[0].mxu0
        %v609 = vpop.f32.mrb[0].mxu0
        %v610 = vadd.f32 %v314, %v609
        %v611 = vpop.f32.mrb[0].mxu0
        %612 = vmatprep.mubr.bf16.mxu0 0
        %613 = vmatmul.mubr.bf16.gmra.mrb[0].mxu0 %v395
        %v614 = vpop.f32.mrb[0].mxu0
        %v615 = vadd.f32 %v314, %v614
        %v616 = vpop.f32.mrb[0].mxu0
        %v617 = vpop.f32.mrb[0].mxu0
        %v618 = vadd.f32 %v314, %v617
        %v619 = vpop.f32.mrb[0].mxu0
        %620 = vdwg.mxu0
        %vm621 = vcmp.ge.f32.partialorder %v495, 0.0
        %vm622 = vcmp.ge.f32.partialorder %v498, 0.0
        %vm623 = vcmp.ge.f32.partialorder %v503, 0.0
        %vm624 = vcmp.ge.f32.partialorder %v506, 0.0
        %vm625 = vcmp.ge.f32.partialorder %v511, 0.0
        %vm626 = vcmp.ge.f32.partialorder %v514, 0.0
        %vm627 = vcmp.ge.f32.partialorder %v519, 0.0
        %vm628 = vcmp.ge.f32.partialorder %v522, 0.0
        %vm629 = vcmp.ge.f32.partialorder %v527, 0.0
        %vm630 = vcmp.ge.f32.partialorder %v530, 0.0
        %vm631 = vcmp.ge.f32.partialorder %v535, 0.0
        %vm632 = vcmp.ge.f32.partialorder %v538, 0.0
        %vm633 = vcmp.ge.f32.partialorder %v543, 0.0
        %vm634 = vcmp.ge.f32.partialorder %v546, 0.0
        %vm635 = vcmp.ge.f32.partialorder %v551, 0.0
        %vm636 = vcmp.ge.f32.partialorder %v554, 0.0
        %vm637 = vcmp.ge.f32.partialorder %v559, 0.0
        %vm638 = vcmp.ge.f32.partialorder %v562, 0.0
        %vm639 = vcmp.ge.f32.partialorder %v567, 0.0
        %vm640 = vcmp.ge.f32.partialorder %v570, 0.0
        %vm641 = vcmp.ge.f32.partialorder %v575, 0.0
        %vm642 = vcmp.ge.f32.partialorder %v578, 0.0
        %vm643 = vcmp.ge.f32.partialorder %v583, 0.0
        %vm644 = vcmp.ge.f32.partialorder %v586, 0.0
        %vm645 = vcmp.ge.f32.partialorder %v591, 0.0
        %vm646 = vcmp.ge.f32.partialorder %v594, 0.0
        %vm647 = vcmp.ge.f32.partialorder %v599, 0.0
        %vm648 = vcmp.ge.f32.partialorder %v602, 0.0
        %vm649 = vcmp.ge.f32.partialorder %v607, 0.0
        %vm650 = vcmp.ge.f32.partialorder %v610, 0.0
        %vm651 = vcmp.ge.f32.partialorder %v615, 0.0
        %vm652 = vcmp.ge.f32.partialorder %v618, 0.0
        %v653 = vmul.f32 %v495, 0.2
        %v654 = vmul.f32 %v498, 0.2
        %v655 = vmul.f32 %v503, 0.2
        %v656 = vmul.f32 %v506, 0.2
        %v657 = vmul.f32 %v511, 0.2
        %v658 = vmul.f32 %v514, 0.2
        %v659 = vmul.f32 %v519, 0.2
        %v660 = vmul.f32 %v522, 0.2
        %v661 = vmul.f32 %v527, 0.2
        %v662 = vmul.f32 %v530, 0.2
        %v663 = vmul.f32 %v535, 0.2
        %v664 = vmul.f32 %v538, 0.2
        %v665 = vmul.f32 %v543, 0.2
        %v666 = vmul.f32 %v546, 0.2
        %v667 = vmul.f32 %v551, 0.2
        %v668 = vmul.f32 %v554, 0.2
        %v669 = vmul.f32 %v559, 0.2
        %v670 = vmul.f32 %v562, 0.2
        %v671 = vmul.f32 %v567, 0.2
        %v672 = vmul.f32 %v570, 0.2
        %v673 = vmul.f32 %v575, 0.2
        %v674 = vmul.f32 %v578, 0.2
        %v675 = vmul.f32 %v583, 0.2
        %v676 = vmul.f32 %v586, 0.2
        %v677 = vmul.f32 %v591, 0.2
        %v678 = vmul.f32 %v594, 0.2
        %v679 = vmul.f32 %v599, 0.2
        %v680 = vmul.f32 %v602, 0.2
        %v681 = vmul.f32 %v607, 0.2
        %v682 = vmul.f32 %v610, 0.2
        %v683 = vmul.f32 %v615, 0.2
        %v684 = vmul.f32 %v618, 0.2
        %v685 = vsel %vm621, %v495, %v653
        %v686 = vsel %vm622, %v498, %v654
        %v687 = vsel %vm623, %v503, %v655
        %v688 = vsel %vm624, %v506, %v656
        %v689 = vsel %vm625, %v511, %v657
        %v690 = vsel %vm626, %v514, %v658
        %v691 = vsel %vm627, %v519, %v659
        %v692 = vsel %vm628, %v522, %v660
        %v693 = vsel %vm629, %v527, %v661
        %v694 = vsel %vm630, %v530, %v662
        %v695 = vsel %vm631, %v535, %v663
        %v696 = vsel %vm632, %v538, %v664
        %v697 = vsel %vm633, %v543, %v665
        %v698 = vsel %vm634, %v546, %v666
        %v699 = vsel %vm635, %v551, %v667
        %v700 = vsel %vm636, %v554, %v668
        %v701 = vsel %vm637, %v559, %v669
        %v702 = vsel %vm638, %v562, %v670
        %v703 = vsel %vm639, %v567, %v671
        %v704 = vsel %vm640, %v570, %v672
        %v705 = vsel %vm641, %v575, %v673
        %v706 = vsel %vm642, %v578, %v674
        %v707 = vsel %vm643, %v583, %v675
        %v708 = vsel %vm644, %v586, %v676
        %v709 = vsel %vm645, %v591, %v677
        %v710 = vsel %vm646, %v594, %v678
        %v711 = vsel %vm647, %v599, %v679
        %v712 = vsel %vm648, %v602, %v680
        %v713 = vsel %vm649, %v607, %v681
        %v714 = vsel %vm650, %v610, %v682
        %v715 = vsel %vm651, %v615, %v683
        %v716 = vsel %vm652, %v618, %v684
        %v717 = vpack.c.bf16 %v686, %v685
        %v718 = vpack.c.bf16 %v688, %v687
        %v719 = vpack.c.bf16 %v690, %v689
        %v720 = vpack.c.bf16 %v692, %v691
        %v721 = vpack.c.bf16 %v694, %v693
        %v722 = vpack.c.bf16 %v696, %v695
        %v723 = vpack.c.bf16 %v698, %v697
        %v724 = vpack.c.bf16 %v700, %v699
        %v725 = vpack.c.bf16 %v702, %v701
        %v726 = vpack.c.bf16 %v704, %v703
        %v727 = vpack.c.bf16 %v706, %v705
        %v728 = vpack.c.bf16 %v708, %v707
        %v729 = vpack.c.bf16 %v710, %v709
        %v730 = vpack.c.bf16 %v712, %v711
        %v731 = vpack.c.bf16 %v714, %v713
        %v732 = vpack.c.bf16 %v716, %v715
        %v749 = vunpack.c.l.b16 %v717
        %v750 = vunpack.c.h.b16 %v717
        %v751 = vunpack.c.l.b16 %v718
        %v752 = vunpack.c.h.b16 %v718
        %v753 = vunpack.c.l.b16 %v719
        %v754 = vunpack.c.h.b16 %v719
        %v755 = vunpack.c.l.b16 %v720
        %v756 = vunpack.c.h.b16 %v720
        %v757 = vunpack.c.l.b16 %v721
        %v758 = vunpack.c.h.b16 %v721
        %v759 = vunpack.c.l.b16 %v722
        %v760 = vunpack.c.h.b16 %v722
        %v761 = vunpack.c.l.b16 %v723
        %v762 = vunpack.c.h.b16 %v723
        %v763 = vunpack.c.l.b16 %v724
        %v764 = vunpack.c.h.b16 %v724
        %v765 = vunpack.c.l.b16 %v725
        %v766 = vunpack.c.h.b16 %v725
        %v767 = vunpack.c.l.b16 %v726
        %v768 = vunpack.c.h.b16 %v726
        %v769 = vunpack.c.l.b16 %v727
        %v770 = vunpack.c.h.b16 %v727
        %v771 = vunpack.c.l.b16 %v728
        %v772 = vunpack.c.h.b16 %v728
        %v773 = vunpack.c.l.b16 %v729
        %v774 = vunpack.c.h.b16 %v729
        %v775 = vunpack.c.l.b16 %v730
        %v776 = vunpack.c.h.b16 %v730
        %v777 = vunpack.c.l.b16 %v731
        %v778 = vunpack.c.h.b16 %v731
        %v779 = vunpack.c.l.b16 %v732
        %v780 = vunpack.c.h.b16 %v732
        %v781 = vpack.c.b16 %v749, %v749
        %v782 = vpack.c.b16 %v750, %v750
        %v783 = vpack.c.b16 %v751, %v751
        %v784 = vpack.c.b16 %v752, %v752
        %v785 = vpack.c.b16 %v753, %v753
        %v786 = vpack.c.b16 %v754, %v754
        %v787 = vpack.c.b16 %v755, %v755
        %v788 = vpack.c.b16 %v756, %v756
        %v789 = vpack.c.b16 %v757, %v757
        %v790 = vpack.c.b16 %v758, %v758
        %v791 = vpack.c.b16 %v759, %v759
        %v792 = vpack.c.b16 %v760, %v760
        %v793 = vpack.c.b16 %v761, %v761
        %v794 = vpack.c.b16 %v762, %v762
        %v795 = vpack.c.b16 %v763, %v763
        %v796 = vpack.c.b16 %v764, %v764
        %v797 = vpack.c.b16 %v765, %v765
        %v798 = vpack.c.b16 %v766, %v766
        %v799 = vpack.c.b16 %v767, %v767
        %v800 = vpack.c.b16 %v768, %v768
        %v801 = vpack.c.b16 %v769, %v769
        %v802 = vpack.c.b16 %v770, %v770
        %v803 = vpack.c.b16 %v771, %v771
        %v804 = vpack.c.b16 %v772, %v772
        %v805 = vpack.c.b16 %v773, %v773
        %v806 = vpack.c.b16 %v774, %v774
        %v807 = vpack.c.b16 %v775, %v775
        %v808 = vpack.c.b16 %v776, %v776
        %v809 = vpack.c.b16 %v777, %v777
        %v810 = vpack.c.b16 %v778, %v778
        %v811 = vpack.c.b16 %v779, %v779
        %v812 = vpack.c.b16 %v780, %v780
        %845 = vst [vmem:[%s257] sm:$0xf] %v781
        %846 = vst [vmem:[%s257 + $0x4] sm:$0xf] %v782
        %847 = vst [vmem:[%s257 + $0x8] sm:$0xf] %v783
        %848 = vst [vmem:[%s257 + $0xc] sm:$0xf] %v784
        %849 = vst [vmem:[%s257 + $0x10] sm:$0xf] %v785
        %850 = vst [vmem:[%s257 + $0x14] sm:$0xf] %v786
        %851 = vst [vmem:[%s257 + $0x18] sm:$0xf] %v787
        %852 = vst [vmem:[%s257 + $0x1c] sm:$0xf] %v788
        %853 = vst [vmem:[%s257 + $0x20] sm:$0xf] %v789
        %854 = vst [vmem:[%s257 + $0x24] sm:$0xf] %v790
        %855 = vst [vmem:[%s257 + $0x28] sm:$0xf] %v791
        %856 = vst [vmem:[%s257 + $0x2c] sm:$0xf] %v792
        %857 = vst [vmem:[%s257 + $0x30] sm:$0xf] %v793
        %858 = vst [vmem:[%s257 + $0x34] sm:$0xf] %v794
        %859 = vst [vmem:[%s257 + $0x38] sm:$0xf] %v795
        %860 = vst [vmem:[%s257 + $0x3c] sm:$0xf] %v796
        %861 = vst [vmem:[%s257 + $0x40] sm:$0xf] %v797
        %862 = vst [vmem:[%s257 + $0x44] sm:$0xf] %v798
        %863 = vst [vmem:[%s257 + $0x48] sm:$0xf] %v799
        %864 = vst [vmem:[%s257 + $0x4c] sm:$0xf] %v800
        %865 = vst [vmem:[%s257 + $0x50] sm:$0xf] %v801
        %866 = vst [vmem:[%s257 + $0x54] sm:$0xf] %v802
        %867 = vst [vmem:[%s257 + $0x58] sm:$0xf] %v803
        %868 = vst [vmem:[%s257 + $0x5c] sm:$0xf] %v804
        %869 = vst [vmem:[%s257 + $0x60] sm:$0xf] %v805
        %870 = vst [vmem:[%s257 + $0x64] sm:$0xf] %v806
        %871 = vst [vmem:[%s257 + $0x68] sm:$0xf] %v807
        %872 = vst [vmem:[%s257 + $0x6c] sm:$0xf] %v808
        %873 = vst [vmem:[%s257 + $0x70] sm:$0xf] %v809
        %874 = vst [vmem:[%s257 + $0x74] sm:$0xf] %v810
        %875 = vst [vmem:[%s257 + $0x78] sm:$0xf] %v811
        %876 = vst [vmem:[%s257 + $0x7c] sm:$0xf] %v812
        %s877 = sand.u32 %s141, 1
        %s878 = scalar_lea.sflag [#allocation4], %s877
        %s879 = sand.u32 %s141, 1
        %s880 = smul.addr %s879, 128
        %s881 = scalar_lea.vmem [#allocation7], %s880
        // Predicated region
        $region49: #{tpu_custom_call.1} parent=39 // pred_check
          %p882 = pneg %p151
        $region50: #{tpu_custom_call.1} parent=39 // pred_check_branch
          %884 = sbr.rel (%p882) target = $region52
        $region51: #{tpu_custom_call.1} parent=39 // pred_region
          %s885 = smul.u32 32, %s23
          %s887 = ssub.s32 2048, 2048
          %888 = vsyncadd %s878, %s887
          %s889 = smul.addr %s885, 64
          %s890 = scalar_lea.hbm %s5, %s889
          %s891 = sshll.u32 %s881, 4
          %s892 = int_to_ptr.vmem [resolvable:$true] %s891
          %897 = dma.vmem_to_hbm [thread:$0]  %s892, 2048, %s890, %s878, 64, 64, 4
        $region52: #{tpu_custom_call.1} parent=39 // pred_fallthru
          _
      $region40: #{tpu_custom_call.1} parent=5 // pred_fallthru
        _
      %p898 = scmp.le.s32.totalorder 2, %s18
      // Predicated region
      $region53: #{tpu_custom_call.1} parent=5 // pred_check
        %p899 = pneg %p898
      $region54: #{tpu_custom_call.1} parent=5 // pred_check_branch
        %901 = sbr.rel (%p899) target = $region56
      $region55: #{tpu_custom_call.1} parent=5 // pred_region
        %s902 = ssub.s32 %s18, 2
        // Predicated region
        $region57: #{tpu_custom_call.1} parent=55 // pred_check
          %p903 = pneg %p157
        $region58: #{tpu_custom_call.1} parent=55 // pred_check_branch
          %905 = sbr.rel (%p903) target = $region60
        $region59: #{tpu_custom_call.1} parent=55 // pred_region
          %s906 = sand.u32 %s142, 1
          %s907 = scalar_lea.sflag [#allocation4], %s906
          %s908 = sand.u32 %s142, 1
          %s909 = smul.addr %s908, 128
          %s910 = scalar_lea.vmem [#allocation7], %s909
          %911 = dma.done %s907, 2048
        $region60: #{tpu_custom_call.1} parent=55 // pred_fallthru
          _
      $region56: #{tpu_custom_call.1} parent=5 // pred_fallthru
        _
    $region6: #{tpu_custom_call.1} parent=1 // loop_footer
      %s22 = sadd.s32 1, %s18
    $region7: #{tpu_custom_call.1} parent=1 // loop_footer_branch
      %17 = sbr.rel target = $region3
    $region8: #{tpu_custom_call.1} parent=1 // loop_exit
      _
    %912 = vsyncpa [#allocation3], 1
    %s913 = scalar_lea.sflag [#allocation3], 1
    %914 = vsyncpa %s913, 1
    %915 = vsyncpa [#allocation6], 1
    %916 = vsyncpa [#allocation4], 1
    %s917 = scalar_lea.sflag [#allocation4], 1
    %918 = vsyncpa %s917, 1

</llo_original>
